<compile_context>
chip_gen: v5e
topology: v5e:2x2
jax: 0.10.0
libtpu: 0.0.40
codegen_flags: <defaults>
</compile_context>

<pallas_src>
import functools

import jax
import jax.numpy as jnp
from jax.experimental import pallas as pl
from jax.experimental.pallas import tpu as pltpu

EPS = 1e-08


def _round_up(n, m):
    return ((n + m - 1) // m) * m


def _cdiv(a, b):
    return (a + b - 1) // b


def _mxu_width():
    """MXU tile width: 128 on v2-v5, 256 on v6e/v7x (and default for unknown)."""
    try:
        kind = jax.devices()[0].device_kind.lower()
    except Exception:
        return 256
    if any(t in kind for t in ("v2", "v3", "v4", "v5")):
        return 128
    return 256


def _flow_lr_exp_kernel(x_ref, *refs, dim):
    # refs = (w0_blk, b0, w1_blk, b1, ..., wlast_blk, blast, out_ref)
    out_ref = refs[-1]
    params = refs[:-1]
    n_linear = len(params) // 2

    x = x_ref[...]                                    # (tb, G*dim) f32
    h = x.astype(jnp.bfloat16)                        # MXU operands in bf16

    # Linear+ReLU stack: bf16 block-diagonal matmuls with f32 accumulation.
    # w0_blk has zero rows at every group's x1 column, so feeding the full packed
    # row is equivalent to feeding x[:, 1:] per group.
    for i in range(n_linear - 1):
        w = params[2 * i][...]                        # bf16 (in, out)
        b = params[2 * i + 1][...]                    # f32  (1, out)
        a = jnp.dot(h, w, preferred_element_type=jnp.float32) + b
        h = jnp.maximum(a, 0.0).astype(jnp.bfloat16)  # bias/ReLU on VPU in f32

    # Final Linear(H, 1): block-diagonal (G*H, G*dim) weight places each group's g
    # directly at lane g*dim; all other lanes receive exactly 0 (discarded below).
    w_last = params[-2][...]                          # bf16 (G*H, G*dim)
    b_last = params[-1][...]                          # f32  (1, G*dim)
    g = jnp.dot(h, w_last, preferred_element_type=jnp.float32) + b_last

    # y1 = exp(x1) / (eps + g^2): EUP exp, exact VPU reciprocal (free; MXU bound).
    inv = 1.0 / (EPS + g * g)                         # (tb, G*dim) f32
    lane = jax.lax.broadcasted_iota(jnp.int32, x.shape, 1)
    # Single unmasked full-row store: lane g*dim <- y1 of group g, others <- x.
    out_ref[...] = jnp.where(lane % dim == 0, jnp.exp(x) * inv, x)


def flow_lr_exp_forward(x, params, *, block_rows=2048, group=None):
    """x: (B, dim) f32; params: flat [w0, b0, w1, b1, ...] with w_i shaped (in, out)
    and b_i shaped (1, out); the last layer has out == 1.  Matches
    flowLRExp.forward."""
    x = jnp.asarray(x, jnp.float32)
    B, dim = x.shape
    hidden = params[0].shape[1]

    # Lane-packing factor: G batch groups per packed row so the block-diagonal
    # hidden matmuls fill the MXU width (G*H = 256 on v6e/v7x, 128 on v5e etc.).
    G = int(group) if group is not None else max(1, _mxu_width() // hidden)

    # One-time parameter prep (outside the kernel):
    #   * w0 gets a zero top row (x1 column contributes 0 -> equivalent to x[:, 1:])
    #   * every weight -> G-block-diagonal bf16 matrix (kron with I_G)
    #   * last weight is right-padded to (H, dim) before the kron so each group's g
    #     lands directly in lane g*dim of the packed row; bias padded/tiled likewise
    #   * biases stay f32 (added after the f32-accumulated matmul)
    eye = jnp.eye(G, dtype=jnp.float32)
    n_linear = len(params) // 2
    prepped = []
    for i in range(n_linear):
        w = jnp.asarray(params[2 * i], jnp.float32)
        b = jnp.asarray(params[2 * i + 1], jnp.float32)
        if i == 0:
            w = jnp.pad(w, ((1, 0), (0, 0)))                  # (dim, H)
        if i == n_linear - 1:
            w = jnp.pad(w, ((0, 0), (0, dim - 1)))            # (H, dim), col 0 = w
            b = jnp.pad(b, ((0, 0), (0, dim - 1)))            # (1, dim)
        prepped.append(jnp.kron(eye, w).astype(jnp.bfloat16))  # block-diagonal
        prepped.append(jnp.tile(b, (1, G)))                     # f32

    # Batch tiling over packed rows (each packed row = G original rows).  Cap the
    # tile so large batches get >= 2 grid steps (v7x megacore) while a single tile
    # stays well inside v5e's 16 MiB default scoped VMEM.
    rows = _cdiv(B, G)
    tb = max(8, min(_round_up(block_rows, 8),
                    _round_up(max(_cdiv(rows, 2), 8), 8)))
    n_blocks = _cdiv(rows, tb)
    rows_pad = n_blocks * tb
    b_pad = rows_pad * G
    if b_pad != B:
        # TODO(synk): for B not a tile multiple this materializes a padded copy; a
        # cdiv-grid with an in-kernel tail mask would avoid the extra HBM pass.
        x = jnp.pad(x, ((0, b_pad - B), (0, 0)))
    xp = x.reshape(rows_pad, G * dim)                 # free: rows are contiguous

    row_spec = pl.BlockSpec((tb, G * dim), lambda i: (i, 0))
    # Weights/biases: full-array blocks, constant index map -> stay VMEM resident.
    # (pipeline_mode=pl.Buffered(1) would save their second buffer; skipped here —
    #  the params are tiny and single-buffering them is a marginal VMEM win.)
    param_specs = [pl.BlockSpec(p.shape, lambda i: (0, 0)) for p in prepped]

    out = pl.pallas_call(
        functools.partial(_flow_lr_exp_kernel, dim=dim),
        out_shape=jax.ShapeDtypeStruct((rows_pad, G * dim), jnp.float32),
        grid=(n_blocks,),
        in_specs=[row_spec] + param_specs,
        out_specs=row_spec,
        compiler_params=pltpu.CompilerParams(
            dimension_semantics=("parallel",)),
    )(xp, *prepped)

    out = out.reshape(b_pad, dim)
    return out[:B] if b_pad != B else out


def init_params(key, dim, hidden_dim, num_layers):
    """Deterministic init matching build_relu's layer shapes:
       Linear(dim-1, H), [Linear(H, H)] * num_layers, Linear(H, 1)."""
    sizes = [(dim - 1, hidden_dim)]
    sizes += [(hidden_dim, hidden_dim)] * num_layers
    sizes += [(hidden_dim, 1)]
    params = []
    for fan_in, fan_out in sizes:
        key, kw, kb = jax.random.split(key, 3)
        bound = 1.0 / jnp.sqrt(jnp.float32(fan_in))
        w = jax.random.uniform(kw, (fan_in, fan_out), jnp.float32, -bound, bound)
        b = jax.random.uniform(kb, (1, fan_out), jnp.float32, -bound, bound)
        params += [w, b]
    return params


def reference_forward(x, params, *, matmul_dtype=jnp.float32):
    """Plain-JAX reference.  matmul_dtype=bf16 mirrors the kernel's MXU precision
    (bf16 operands, f32 accumulation); f32 gives the exact PyTorch-module math."""
    x1, x2 = x[:, :1], x[:, 1:]
    h = x2
    n = len(params) // 2
    for i in range(n):
        w = params[2 * i].astype(matmul_dtype)
        h = jnp.dot(h.astype(matmul_dtype), w,
                    preferred_element_type=jnp.float32) + params[2 * i + 1]
        if i < n - 1:
            h = jnp.maximum(h, 0.0)
    g = h
    y1 = jnp.exp(x1) / (EPS + g * g)
    return jnp.concatenate([y1, x2], axis=1)


if __name__ == "__main__":
    # Small shapes consistent with the module: dim=5 (reluNet input dim-1=4),
    # hidden_dim=32, num_layers=2, batch=8.
    B, dim, hidden_dim, num_layers = 8, 5, 32, 2

    key = jax.random.PRNGKey(0)
    key, kx = jax.random.split(key)
    x = jax.random.normal(kx, (B, dim), jnp.float32)
    params = init_params(key, dim, hidden_dim, num_layers)

    out = jax.block_until_ready(flow_lr_exp_forward(x, params))
    assert out.shape == (B, dim)

    # Columns 1..dim-1 are a pure pass-through of x: must match bit-exactly.
    assert jnp.array_equal(out[:, 1:], x[:, 1:]), "pass-through columns differ"

    # Column 0 (y1): compare against a precision-matched reference — the kernel
    # intentionally runs the MLP on the MXU in bf16 with f32 accumulation, so the
    # fair check is vs. a bf16-matmul reference (the pure-f32 module reference only
    # differs by that chosen matmul precision).
    ref_bf16 = reference_forward(x, params, matmul_dtype=jnp.bfloat16)
    assert jnp.allclose(out[:, :1], ref_bf16[:, :1], rtol=1e-2, atol=1e-6), \
        "y1 mismatch vs bf16-matched reference"

    print("KERNEL_OK")
</pallas_src>

<mosaic_0001>
module attributes {stable_mosaic.version = 11 : i64} {
  func.func @_flow_lr_exp_kernel(%arg0: i32, %arg1: memref<8x40xf32, #tpu.memory_space<vmem>>, %arg2: memref<40x256xbf16, #tpu.memory_space<vmem>>, %arg3: memref<1x256xf32, #tpu.memory_space<vmem>>, %arg4: memref<256x256xbf16, #tpu.memory_space<vmem>>, %arg5: memref<1x256xf32, #tpu.memory_space<vmem>>, %arg6: memref<256x256xbf16, #tpu.memory_space<vmem>>, %arg7: memref<1x256xf32, #tpu.memory_space<vmem>>, %arg8: memref<256x40xbf16, #tpu.memory_space<vmem>>, %arg9: memref<1x40xf32, #tpu.memory_space<vmem>>, %arg10: memref<8x40xf32, #tpu.memory_space<vmem>>) attributes {dimension_semantics = [#tpu.dimension_semantics<parallel>], iteration_bounds = array<i64: 1>, scalar_prefetch = 0 : i64, scratch_operands = 0 : i64, tpu.core_type = #tpu.core_type<tc>, window_params = [{transform_indices = @transform_0, window_bounds = array<i64: 8, 40>}, {pipeline_mode = #tpu.pipeline_mode<synchronous>, transform_indices = @transform_1, window_bounds = array<i64: 40, 256>}, {pipeline_mode = #tpu.pipeline_mode<synchronous>, transform_indices = @transform_2, window_bounds = array<i64: 1, 256>}, {pipeline_mode = #tpu.pipeline_mode<synchronous>, transform_indices = @transform_3, window_bounds = array<i64: 256, 256>}, {pipeline_mode = #tpu.pipeline_mode<synchronous>, transform_indices = @transform_4, window_bounds = array<i64: 1, 256>}, {pipeline_mode = #tpu.pipeline_mode<synchronous>, transform_indices = @transform_5, window_bounds = array<i64: 256, 256>}, {pipeline_mode = #tpu.pipeline_mode<synchronous>, transform_indices = @transform_6, window_bounds = array<i64: 1, 256>}, {pipeline_mode = #tpu.pipeline_mode<synchronous>, transform_indices = @transform_7, window_bounds = array<i64: 256, 40>}, {pipeline_mode = #tpu.pipeline_mode<synchronous>, transform_indices = @transform_8, window_bounds = array<i64: 1, 40>}, {transform_indices = @transform_9, window_bounds = array<i64: 8, 40>}]} {
    %c0 = arith.constant 0 : index
    %c0_0 = arith.constant 0 : index
    %0 = vector.load %arg1[%c0, %c0_0] : memref<8x40xf32, #tpu.memory_space<vmem>>, vector<8x40xf32>
    %1 = arith.truncf %0 : vector<8x40xf32> to vector<8x40xbf16>
    %c0_1 = arith.constant 0 : index
    %c0_2 = arith.constant 0 : index
    %2 = vector.load %arg2[%c0_1, %c0_2] : memref<40x256xbf16, #tpu.memory_space<vmem>>, vector<40x256xbf16>
    %c0_3 = arith.constant 0 : index
    %c0_4 = arith.constant 0 : index
    %3 = vector.load %arg3[%c0_3, %c0_4] : memref<1x256xf32, #tpu.memory_space<vmem>>, vector<1x256xf32>
    %cst = arith.constant dense<0.000000e+00> : vector<8x256xf32>
    %4 = tpu.matmul %1, %2, %cst {dimension_numbers = #tpu.dot_dimension_numbers<[1], [0], [0], [1], [0, 0, 1, 1], [], []>} : vector<8x40xbf16>, vector<40x256xbf16>, vector<8x256xf32> -> vector<8x256xf32>
    %5 = vector.broadcast %3 : vector<1x256xf32> to vector<8x256xf32>
    %6 = arith.addf %4, %5 : vector<8x256xf32>
    %cst_5 = arith.constant 0.000000e+00 : f32
    %7 = vector.broadcast %cst_5 : f32 to vector<8x256xf32>
    %8 = arith.maximumf %6, %7 : vector<8x256xf32>
    %9 = arith.truncf %8 : vector<8x256xf32> to vector<8x256xbf16>
    %c0_6 = arith.constant 0 : index
    %c0_7 = arith.constant 0 : index
    %10 = vector.load %arg4[%c0_6, %c0_7] : memref<256x256xbf16, #tpu.memory_space<vmem>>, vector<256x256xbf16>
    %c0_8 = arith.constant 0 : index
    %c0_9 = arith.constant 0 : index
    %11 = vector.load %arg5[%c0_8, %c0_9] : memref<1x256xf32, #tpu.memory_space<vmem>>, vector<1x256xf32>
    %cst_10 = arith.constant dense<0.000000e+00> : vector<8x256xf32>
    %12 = tpu.matmul %9, %10, %cst_10 {dimension_numbers = #tpu.dot_dimension_numbers<[1], [0], [0], [1], [0, 0, 1, 1], [], []>} : vector<8x256xbf16>, vector<256x256xbf16>, vector<8x256xf32> -> vector<8x256xf32>
    %13 = vector.broadcast %11 : vector<1x256xf32> to vector<8x256xf32>
    %14 = arith.addf %12, %13 : vector<8x256xf32>
    %cst_11 = arith.constant 0.000000e+00 : f32
    %15 = vector.broadcast %cst_11 : f32 to vector<8x256xf32>
    %16 = arith.maximumf %14, %15 : vector<8x256xf32>
    %17 = arith.truncf %16 : vector<8x256xf32> to vector<8x256xbf16>
    %c0_12 = arith.constant 0 : index
    %c0_13 = arith.constant 0 : index
    %18 = vector.load %arg6[%c0_12, %c0_13] : memref<256x256xbf16, #tpu.memory_space<vmem>>, vector<256x256xbf16>
    %c0_14 = arith.constant 0 : index
    %c0_15 = arith.constant 0 : index
    %19 = vector.load %arg7[%c0_14, %c0_15] : memref<1x256xf32, #tpu.memory_space<vmem>>, vector<1x256xf32>
    %cst_16 = arith.constant dense<0.000000e+00> : vector<8x256xf32>
    %20 = tpu.matmul %17, %18, %cst_16 {dimension_numbers = #tpu.dot_dimension_numbers<[1], [0], [0], [1], [0, 0, 1, 1], [], []>} : vector<8x256xbf16>, vector<256x256xbf16>, vector<8x256xf32> -> vector<8x256xf32>
    %21 = vector.broadcast %19 : vector<1x256xf32> to vector<8x256xf32>
    %22 = arith.addf %20, %21 : vector<8x256xf32>
    %cst_17 = arith.constant 0.000000e+00 : f32
    %23 = vector.broadcast %cst_17 : f32 to vector<8x256xf32>
    %24 = arith.maximumf %22, %23 : vector<8x256xf32>
    %25 = arith.truncf %24 : vector<8x256xf32> to vector<8x256xbf16>
    %c0_18 = arith.constant 0 : index
    %c0_19 = arith.constant 0 : index
    %26 = vector.load %arg8[%c0_18, %c0_19] : memref<256x40xbf16, #tpu.memory_space<vmem>>, vector<256x40xbf16>
    %c0_20 = arith.constant 0 : index
    %c0_21 = arith.constant 0 : index
    %27 = vector.load %arg9[%c0_20, %c0_21] : memref<1x40xf32, #tpu.memory_space<vmem>>, vector<1x40xf32>
    %cst_22 = arith.constant dense<0.000000e+00> : vector<8x40xf32>
    %28 = tpu.matmul %25, %26, %cst_22 {dimension_numbers = #tpu.dot_dimension_numbers<[1], [0], [0], [1], [0, 0, 1, 1], [], []>} : vector<8x256xbf16>, vector<256x40xbf16>, vector<8x40xf32> -> vector<8x40xf32>
    %29 = vector.broadcast %27 : vector<1x40xf32> to vector<8x40xf32>
    %30 = arith.addf %28, %29 : vector<8x40xf32>
    %31 = arith.mulf %30, %30 : vector<8x40xf32>
    %cst_23 = arith.constant 9.99999993E-9 : f32
    %32 = vector.broadcast %cst_23 : f32 to vector<8x40xf32>
    %33 = arith.addf %32, %31 : vector<8x40xf32>
    %cst_24 = arith.constant 1.000000e+00 : f32
    %34 = vector.broadcast %cst_24 : f32 to vector<8x40xf32>
    %35 = arith.divf %34, %33 : vector<8x40xf32>
    %36 = tpu.iota {dimensions = array<i32: 1>} : vector<8x40xi32>
    %c5_i32 = arith.constant 5 : i32
    %c0_i32 = arith.constant 0 : i32
    %37 = arith.cmpi eq, %c5_i32, %c0_i32 : i32
    %c1_i32 = arith.constant 1 : i32
    %38 = arith.select %37, %c1_i32, %c5_i32 : i32
    %39 = vector.broadcast %38 : i32 to vector<8x40xi32>
    %40 = arith.remsi %36, %39 : vector<8x40xi32>
    %c0_i32_25 = arith.constant 0 : i32
    %41 = vector.broadcast %c0_i32_25 : i32 to vector<8x40xi32>
    %42 = arith.cmpi ne, %40, %41 : vector<8x40xi32>
    %c0_i32_26 = arith.constant 0 : i32
    %43 = vector.broadcast %c0_i32_26 : i32 to vector<8x40xi32>
    %44 = arith.cmpi slt, %40, %43 : vector<8x40xi32>
    %c0_i32_27 = arith.constant 0 : i32
    %45 = arith.cmpi slt, %38, %c0_i32_27 : i32
    %46 = vector.broadcast %45 : i1 to vector<8x40xi1>
    %47 = vector.broadcast %46 : vector<8x40xi1> to vector<8x40xi1>
    %48 = arith.xori %44, %47 : vector<8x40xi1>
    %49 = arith.andi %48, %42 : vector<8x40xi1>
    %50 = vector.broadcast %38 : i32 to vector<8x40xi32>
    %51 = arith.addi %40, %50 : vector<8x40xi32>
    %52 = arith.select %49, %51, %40 : vector<8x40xi1>, vector<8x40xi32>
    %c0_i32_28 = arith.constant 0 : i32
    %53 = vector.broadcast %c0_i32_28 : i32 to vector<8x40xi32>
    %54 = arith.cmpi eq, %52, %53 : vector<8x40xi32>
    %55 = math.exp %0 : vector<8x40xf32>
    %56 = arith.mulf %55, %35 : vector<8x40xf32>
    %57 = arith.select %54, %56, %0 : vector<8x40xi1>, vector<8x40xf32>
    %c0_29 = arith.constant 0 : index
    %c0_30 = arith.constant 0 : index
    %58 = vector.load %arg10[%c0_29, %c0_30] : memref<8x40xf32, #tpu.memory_space<vmem>>, vector<8x40xf32>
    tpu.vector_store %arg10[%c0_29, %c0_30], %57 {strides = array<i32>} : memref<8x40xf32, #tpu.memory_space<vmem>>, vector<8x40xf32>,
    return
  }
  func.func @transform_0(%arg0: i32) -> (i32, i32) {
    %c0_i32 = arith.constant 0 : i32
    %c0_i32_0 = arith.constant 0 : i32
    return %arg0, %c0_i32 : i32, i32
  }
  func.func @transform_1(%arg0: i32) -> (i32, i32) {
    %c0_i32 = arith.constant 0 : i32
    %c0_i32_0 = arith.constant 0 : i32
    %c0_i32_1 = arith.constant 0 : i32
    return %c0_i32, %c0_i32_0 : i32, i32
  }
  func.func @transform_2(%arg0: i32) -> (i32, i32) {
    %c0_i32 = arith.constant 0 : i32
    %c0_i32_0 = arith.constant 0 : i32
    %c0_i32_1 = arith.constant 0 : i32
    return %c0_i32, %c0_i32_0 : i32, i32
  }
  func.func @transform_3(%arg0: i32) -> (i32, i32) {
    %c0_i32 = arith.constant 0 : i32
    %c0_i32_0 = arith.constant 0 : i32
    %c0_i32_1 = arith.constant 0 : i32
    return %c0_i32, %c0_i32_0 : i32, i32
  }
  func.func @transform_4(%arg0: i32) -> (i32, i32) {
    %c0_i32 = arith.constant 0 : i32
    %c0_i32_0 = arith.constant 0 : i32
    %c0_i32_1 = arith.constant 0 : i32
    return %c0_i32, %c0_i32_0 : i32, i32
  }
  func.func @transform_5(%arg0: i32) -> (i32, i32) {
    %c0_i32 = arith.constant 0 : i32
    %c0_i32_0 = arith.constant 0 : i32
    %c0_i32_1 = arith.constant 0 : i32
    return %c0_i32, %c0_i32_0 : i32, i32
  }
  func.func @transform_6(%arg0: i32) -> (i32, i32) {
    %c0_i32 = arith.constant 0 : i32
    %c0_i32_0 = arith.constant 0 : i32
    %c0_i32_1 = arith.constant 0 : i32
    return %c0_i32, %c0_i32_0 : i32, i32
  }
  func.func @transform_7(%arg0: i32) -> (i32, i32) {
    %c0_i32 = arith.constant 0 : i32
    %c0_i32_0 = arith.constant 0 : i32
    %c0_i32_1 = arith.constant 0 : i32
    return %c0_i32, %c0_i32_0 : i32, i32
  }
  func.func @transform_8(%arg0: i32) -> (i32, i32) {
    %c0_i32 = arith.constant 0 : i32
    %c0_i32_0 = arith.constant 0 : i32
    %c0_i32_1 = arith.constant 0 : i32
    return %c0_i32, %c0_i32_0 : i32, i32
  }
  func.func @transform_9(%arg0: i32) -> (i32, i32) {
    %c0_i32 = arith.constant 0 : i32
    %c0_i32_0 = arith.constant 0 : i32
    return %arg0, %c0_i32 : i32, i32
  }
}

</mosaic_0001>

<llo_original>
// kernel: tpu_custom_call.1
$region0: #{tpu_custom_call.1}
  #allocation0 [shape = 'u32[]', space=smem, size = 0x4, offset = 0x4, fixed_abs, tag = 'smem constant byte address 0x4 - core index']
  #allocation1 [shape = 'u32[72,128]{1,0:T(1,128)}', space=vmem, size = 0x9000, scoped, tag = 'internal scratch']
  %s0 = inlined_call_operand.vmem [shape: f32[8,40], index: 0, kind: input, shape index: {}]
  %s1 = inlined_call_operand.vmem [shape: bf16[40,256], index: 1, kind: input, shape index: {}]
  %s2 = inlined_call_operand.vmem [shape: f32[1,256], index: 2, kind: input, shape index: {}]
  %s3 = inlined_call_operand.hbm [shape: bf16[256,256], index: 3, kind: input, shape index: {}]
  %s4 = inlined_call_operand.vmem [shape: f32[1,256], index: 4, kind: input, shape index: {}]
  %s5 = inlined_call_operand.hbm [shape: bf16[256,256], index: 5, kind: input, shape index: {}]
  %s6 = inlined_call_operand.vmem [shape: f32[1,256], index: 6, kind: input, shape index: {}]
  %s7 = inlined_call_operand.vmem [shape: bf16[256,40], index: 7, kind: input, shape index: {}]
  %s8 = inlined_call_operand.vmem [shape: f32[1,40], index: 8, kind: input, shape index: {}]
  %s9 = inlined_call_operand.hbm [shape: f32[8,40], index: 9, kind: output, shape index: {}]
  %s10 = sld [smem:[#allocation0]]
  $region54: #{tpu_custom_call.1} parent=0
    _
  %s12 = ssub.s32 1, %s10
  %s13 = scalar_select 0, %s12, %s10
  $region1: #{tpu_custom_call.1} parent=0
    #allocation2 [shape = 'u8[131072]{0}', space=vmem, size = 0x20000, scoped, tag = 'input window, operand 3, single buffered']
    #allocation3 [shape = 's32[1]{0}', space=sflag, size = 0x4, scoped, tag = 'scoped memory for tpu_custom_call.1']
    #allocation4 [shape = 's32[1]{0}', space=sflag, size = 0x4, scoped, tag = 'scoped memory for tpu_custom_call.1']
    #allocation5 [shape = 'u8[131072]{0}', space=vmem, size = 0x20000, scoped, tag = 'input window, operand 5, single buffered']
    #allocation6 [shape = 's32[1]{0}', space=sflag, size = 0x4, scoped, tag = 'scoped memory for tpu_custom_call.1']
    #allocation7 [shape = 'u8[4096]{0}', space=vmem, size = 0x1000, scoped, tag = 'output window, operand 0, single buffered']
    %14 = vsyncpa [#allocation3], 0
    %15 = vsyncpa [#allocation6], 0
    %16 = vsyncpa [#allocation4], 0
    // Predicated region
    $region2: #{tpu_custom_call.1} parent=1 // pred_check
      _
    $region3: #{tpu_custom_call.1} parent=1 // pred_check_branch
      %18 = sbr.rel (0) target = $region5
    $region4: #{tpu_custom_call.1} parent=1 // pred_region
      _
    $region5: #{tpu_custom_call.1} parent=1 // pred_fallthru
      _
    // Predicated region
    $region6: #{tpu_custom_call.1} parent=1 // pred_check
      _
    $region7: #{tpu_custom_call.1} parent=1 // pred_check_branch
      %20 = sbr.rel (0) target = $region9
    $region8: #{tpu_custom_call.1} parent=1 // pred_region
      _
    $region9: #{tpu_custom_call.1} parent=1 // pred_fallthru
      _
    // Predicated region
    $region10: #{tpu_custom_call.1} parent=1 // pred_check
      _
    $region11: #{tpu_custom_call.1} parent=1 // pred_check_branch
      %22 = sbr.rel (0) target = $region13
    $region12: #{tpu_custom_call.1} parent=1 // pred_region
      _
    $region13: #{tpu_custom_call.1} parent=1 // pred_fallthru
      _
    // Predicated region
    $region14: #{tpu_custom_call.1} parent=1 // pred_check
      _
    $region15: #{tpu_custom_call.1} parent=1 // pred_check_branch
      %24 = sbr.rel (0) target = $region17
    $region16: #{tpu_custom_call.1} parent=1 // pred_region
      %26 = vsyncadd [#allocation3], 0
      %s27 = sshll.u32 %s3, 4
      %s28 = int_to_ptr.hbm [resolvable:$true] %s27
      %s29 = sshll.u32 [#allocation2], 4
      %s30 = int_to_ptr.vmem [resolvable:$true] %s29
      %35 = dma.hbm_to_vmem [thread:$0]  %s28, 4096, %s30, [#allocation3], 128, 128, 8
    $region17: #{tpu_custom_call.1} parent=1 // pred_fallthru
      _
    // Predicated region
    $region18: #{tpu_custom_call.1} parent=1 // pred_check
      _
    $region19: #{tpu_custom_call.1} parent=1 // pred_check_branch
      %37 = sbr.rel (0) target = $region21
    $region20: #{tpu_custom_call.1} parent=1 // pred_region
      _
    $region21: #{tpu_custom_call.1} parent=1 // pred_fallthru
      _
    // Predicated region
    $region22: #{tpu_custom_call.1} parent=1 // pred_check
      _
    $region23: #{tpu_custom_call.1} parent=1 // pred_check_branch
      %39 = sbr.rel (0) target = $region25
    $region24: #{tpu_custom_call.1} parent=1 // pred_region
      %41 = vsyncadd [#allocation6], 0
      %s42 = sshll.u32 %s5, 4
      %s43 = int_to_ptr.hbm [resolvable:$true] %s42
      %s44 = sshll.u32 [#allocation5], 4
      %s45 = int_to_ptr.vmem [resolvable:$true] %s44
      %50 = dma.hbm_to_vmem [thread:$0]  %s43, 4096, %s45, [#allocation6], 128, 128, 8
    $region25: #{tpu_custom_call.1} parent=1 // pred_fallthru
      _
    // Predicated region
    $region26: #{tpu_custom_call.1} parent=1 // pred_check
      _
    $region27: #{tpu_custom_call.1} parent=1 // pred_check_branch
      %52 = sbr.rel (0) target = $region29
    $region28: #{tpu_custom_call.1} parent=1 // pred_region
      _
    $region29: #{tpu_custom_call.1} parent=1 // pred_fallthru
      _
    // Predicated region
    $region30: #{tpu_custom_call.1} parent=1 // pred_check
      _
    $region31: #{tpu_custom_call.1} parent=1 // pred_check_branch
      %54 = sbr.rel (0) target = $region33
    $region32: #{tpu_custom_call.1} parent=1 // pred_region
      _
    $region33: #{tpu_custom_call.1} parent=1 // pred_fallthru
      _
    // Predicated region
    $region34: #{tpu_custom_call.1} parent=1 // pred_check
      _
    $region35: #{tpu_custom_call.1} parent=1 // pred_check_branch
      %56 = sbr.rel (0) target = $region37
    $region36: #{tpu_custom_call.1} parent=1 // pred_region
      _
    $region37: #{tpu_custom_call.1} parent=1 // pred_fallthru
      _
    // Predicated region
    $region38: #{tpu_custom_call.1} parent=1 // pred_check
      _
    $region39: #{tpu_custom_call.1} parent=1 // pred_check_branch
      %58 = sbr.rel (0) target = $region41
    $region40: #{tpu_custom_call.1} parent=1 // pred_region
      %60 = dma.done [#allocation3], 4096
    $region41: #{tpu_custom_call.1} parent=1 // pred_fallthru
      _
    // Predicated region
    $region42: #{tpu_custom_call.1} parent=1 // pred_check
      _
    $region43: #{tpu_custom_call.1} parent=1 // pred_check_branch
      %62 = sbr.rel (0) target = $region45
    $region44: #{tpu_custom_call.1} parent=1 // pred_region
      %64 = dma.done [#allocation6], 4096
    $region45: #{tpu_custom_call.1} parent=1 // pred_fallthru
      _
    %v66 = vld [vmem:[%s0] sm:$0xff]
    %v67 = vpack.c.bf16 %v66, %v66
    %v68 = vld [vmem:[%s1] sm:$0xff]
    %v69 = vld [vmem:[%s1 + $0x8] sm:$0xff]
    %v70 = vld [vmem:[%s1 + $0x10] sm:$0xff]
    %v71 = vld [vmem:[%s1 + $0x18] sm:$0xff]
    %v72 = vld [vmem:[%s1 + $0x20] sm:$0xff]
    %v73 = vld [vmem:[%s2] sm:$0x3]
    %v75 = vperm.slane %v73, 0
    %v76 = vperm.slane %v73, 1
    %v84 = vunpack.c.l.b16 %v68
    %v85 = vunpack.c.h.b16 %v68
    %v86 = vunpack.c.l.b16 %v69
    %v87 = vunpack.c.h.b16 %v69
    %v88 = vunpack.c.l.b16 %v70
    %v89 = vunpack.c.h.b16 %v70
    %v90 = vunpack.c.l.b16 %v71
    %v91 = vunpack.c.h.b16 %v71
    %v92 = vunpack.c.l.b16 %v72
    %v93 = vunpack.c.h.b16 %v72
    %v94 = vpack.c.b16 %v86, %v84
    %v95 = vpack.c.b16 %v87, %v85
    %v96 = vpack.c.b16 %v90, %v88
    %v97 = vpack.c.b16 %v91, %v89
    %v98 = vpack.c.b16 %v92, %v92
    %v99 = vpack.c.b16 %v93, %v93
    %vm104 = vcmask 326656
    %v106 = vsel %vm104, %v67, 0
    %vm108 = vcmask 1043456
    %v110 = vsel %vm108, %v98, 0
    %v113 = vsel %vm108, %v99, 0
    %115 = vmatpush.bf16.msra.mxu0 0
    %116 = vmatpush.bf16.msra.mxu0 0
    %117 = vmatpush.bf16.msra.mxu0 0
    %118 = vmatpush.bf16.msra.mxu0 0
    %119 = vmatpush.bf16.msra.mxu0 0
    %120 = vmatpush.bf16.msra.mxu0 %v110
    %121 = vmatpush.bf16.msra.mxu0 %v96
    %122 = vmatpush.bf16.msra.mxu0 %v94
    %123 = vmatmul.bf16.gmra.mxu0 %v106
    %v124 = vpop.f32.mrf.mxu0
    %v125 = vadd.f32 %v75, %v124
    %v126 = vpop.f32.mrf.mxu0
    %127 = vdwg.mxu0
    %128 = vmatpush.bf16.msra.mxu0 0
    %129 = vmatpush.bf16.msra.mxu0 0
    %130 = vmatpush.bf16.msra.mxu0 0
    %131 = vmatpush.bf16.msra.mxu0 0
    %132 = vmatpush.bf16.msra.mxu0 0
    %133 = vmatpush.bf16.msra.mxu0 %v113
    %134 = vmatpush.bf16.msra.mxu0 %v97
    %135 = vmatpush.bf16.msra.mxu0 %v95
    %136 = vmatmul.bf16.gmra.mxu0 %v106
    %v137 = vpop.f32.mrf.mxu0
    %v138 = vadd.f32 %v76, %v137
    %v139 = vpop.f32.mrf.mxu0
    %140 = vdwg.mxu0
    %v141 = vmax.f32 %v125, 0.0
    %v142 = vmax.f32 %v138, 0.0
    %v143 = vpack.c.bf16 %v141, %v141
    %v144 = vpack.c.bf16 %v142, %v142
    %v145 = vld [vmem:[#allocation2] sm:$0xff]
    %v146 = vld [vmem:[#allocation2 + $0x8] sm:$0xff]
    %v147 = vld [vmem:[#allocation2 + $0x10] sm:$0xff]
    %v148 = vld [vmem:[#allocation2 + $0x18] sm:$0xff]
    %v149 = vld [vmem:[#allocation2 + $0x20] sm:$0xff]
    %v150 = vld [vmem:[#allocation2 + $0x28] sm:$0xff]
    %v151 = vld [vmem:[#allocation2 + $0x30] sm:$0xff]
    %v152 = vld [vmem:[#allocation2 + $0x38] sm:$0xff]
    %v153 = vld [vmem:[#allocation2 + $0x40] sm:$0xff]
    %v154 = vld [vmem:[#allocation2 + $0x48] sm:$0xff]
    %v155 = vld [vmem:[#allocation2 + $0x50] sm:$0xff]
    %v156 = vld [vmem:[#allocation2 + $0x58] sm:$0xff]
    %v157 = vld [vmem:[#allocation2 + $0x60] sm:$0xff]
    %v158 = vld [vmem:[#allocation2 + $0x68] sm:$0xff]
    %v159 = vld [vmem:[#allocation2 + $0x70] sm:$0xff]
    %v160 = vld [vmem:[#allocation2 + $0x78] sm:$0xff]
    %v161 = vld [vmem:[#allocation2 + $0x80] sm:$0xff]
    %v162 = vld [vmem:[#allocation2 + $0x88] sm:$0xff]
    %v163 = vld [vmem:[#allocation2 + $0x90] sm:$0xff]
    %v164 = vld [vmem:[#allocation2 + $0x98] sm:$0xff]
    %v165 = vld [vmem:[#allocation2 + $0xa0] sm:$0xff]
    %v166 = vld [vmem:[#allocation2 + $0xa8] sm:$0xff]
    %v167 = vld [vmem:[#allocation2 + $0xb0] sm:$0xff]
    %v168 = vld [vmem:[#allocation2 + $0xb8] sm:$0xff]
    %v169 = vld [vmem:[#allocation2 + $0xc0] sm:$0xff]
    %v170 = vld [vmem:[#allocation2 + $0xc8] sm:$0xff]
    %v171 = vld [vmem:[#allocation2 + $0xd0] sm:$0xff]
    %v172 = vld [vmem:[#allocation2 + $0xd8] sm:$0xff]
    %v173 = vld [vmem:[#allocation2 + $0xe0] sm:$0xff]
    %v174 = vld [vmem:[#allocation2 + $0xe8] sm:$0xff]
    %v175 = vld [vmem:[#allocation2 + $0xf0] sm:$0xff]
    %v176 = vld [vmem:[#allocation2 + $0xf8] sm:$0xff]
    %v177 = vld [vmem:[%s4] sm:$0x3]
    %v179 = vperm.slane %v177, 0
    %v180 = vperm.slane %v177, 1
    %v215 = vunpack.c.l.b16 %v145
    %v216 = vunpack.c.h.b16 %v145
    %v217 = vunpack.c.l.b16 %v146
    %v218 = vunpack.c.h.b16 %v146
    %v219 = vunpack.c.l.b16 %v147
    %v220 = vunpack.c.h.b16 %v147
    %v221 = vunpack.c.l.b16 %v148
    %v222 = vunpack.c.h.b16 %v148
    %v223 = vunpack.c.l.b16 %v149
    %v224 = vunpack.c.h.b16 %v149
    %v225 = vunpack.c.l.b16 %v150
    %v226 = vunpack.c.h.b16 %v150
    %v227 = vunpack.c.l.b16 %v151
    %v228 = vunpack.c.h.b16 %v151
    %v229 = vunpack.c.l.b16 %v152
    %v230 = vunpack.c.h.b16 %v152
    %v231 = vunpack.c.l.b16 %v153
    %v232 = vunpack.c.h.b16 %v153
    %v233 = vunpack.c.l.b16 %v154
    %v234 = vunpack.c.h.b16 %v154
    %v235 = vunpack.c.l.b16 %v155
    %v236 = vunpack.c.h.b16 %v155
    %v237 = vunpack.c.l.b16 %v156
    %v238 = vunpack.c.h.b16 %v156
    %v239 = vunpack.c.l.b16 %v157
    %v240 = vunpack.c.h.b16 %v157
    %v241 = vunpack.c.l.b16 %v158
    %v242 = vunpack.c.h.b16 %v158
    %v243 = vunpack.c.l.b16 %v159
    %v244 = vunpack.c.h.b16 %v159
    %v245 = vunpack.c.l.b16 %v160
    %v246 = vunpack.c.h.b16 %v160
    %v247 = vunpack.c.l.b16 %v161
    %v248 = vunpack.c.h.b16 %v161
    %v249 = vunpack.c.l.b16 %v162
    %v250 = vunpack.c.h.b16 %v162
    %v251 = vunpack.c.l.b16 %v163
    %v252 = vunpack.c.h.b16 %v163
    %v253 = vunpack.c.l.b16 %v164
    %v254 = vunpack.c.h.b16 %v164
    %v255 = vunpack.c.l.b16 %v165
    %v256 = vunpack.c.h.b16 %v165
    %v257 = vunpack.c.l.b16 %v166
    %v258 = vunpack.c.h.b16 %v166
    %v259 = vunpack.c.l.b16 %v167
    %v260 = vunpack.c.h.b16 %v167
    %v261 = vunpack.c.l.b16 %v168
    %v262 = vunpack.c.h.b16 %v168
    %v263 = vunpack.c.l.b16 %v169
    %v264 = vunpack.c.h.b16 %v169
    %v265 = vunpack.c.l.b16 %v170
    %v266 = vunpack.c.h.b16 %v170
    %v267 = vunpack.c.l.b16 %v171
    %v268 = vunpack.c.h.b16 %v171
    %v269 = vunpack.c.l.b16 %v172
    %v270 = vunpack.c.h.b16 %v172
    %v271 = vunpack.c.l.b16 %v173
    %v272 = vunpack.c.h.b16 %v173
    %v273 = vunpack.c.l.b16 %v174
    %v274 = vunpack.c.h.b16 %v174
    %v275 = vunpack.c.l.b16 %v175
    %v276 = vunpack.c.h.b16 %v175
    %v277 = vunpack.c.l.b16 %v176
    %v278 = vunpack.c.h.b16 %v176
    %v279 = vpack.c.b16 %v217, %v215
    %v280 = vpack.c.b16 %v218, %v216
    %v281 = vpack.c.b16 %v221, %v219
    %v282 = vpack.c.b16 %v222, %v220
    %v283 = vpack.c.b16 %v225, %v223
    %v284 = vpack.c.b16 %v226, %v224
    %v285 = vpack.c.b16 %v229, %v227
    %v286 = vpack.c.b16 %v230, %v228
    %v287 = vpack.c.b16 %v233, %v231
    %v288 = vpack.c.b16 %v234, %v232
    %v289 = vpack.c.b16 %v237, %v235
    %v290 = vpack.c.b16 %v238, %v236
    %v291 = vpack.c.b16 %v241, %v239
    %v292 = vpack.c.b16 %v242, %v240
    %v293 = vpack.c.b16 %v245, %v243
    %v294 = vpack.c.b16 %v246, %v244
    %v295 = vpack.c.b16 %v249, %v247
    %v296 = vpack.c.b16 %v250, %v248
    %v297 = vpack.c.b16 %v253, %v251
    %v298 = vpack.c.b16 %v254, %v252
    %v299 = vpack.c.b16 %v257, %v255
    %v300 = vpack.c.b16 %v258, %v256
    %v301 = vpack.c.b16 %v261, %v259
    %v302 = vpack.c.b16 %v262, %v260
    %v303 = vpack.c.b16 %v265, %v263
    %v304 = vpack.c.b16 %v266, %v264
    %v305 = vpack.c.b16 %v269, %v267
    %v306 = vpack.c.b16 %v270, %v268
    %v307 = vpack.c.b16 %v273, %v271
    %v308 = vpack.c.b16 %v274, %v272
    %v309 = vpack.c.b16 %v277, %v275
    %v310 = vpack.c.b16 %v278, %v276
    %343 = vmatpush.bf16.msra.mxu0 %v293
    %344 = vmatpush.bf16.msra.mxu0 %v291
    %345 = vmatpush.bf16.msra.mxu0 %v289
    %346 = vmatpush.bf16.msra.mxu0 %v287
    %347 = vmatpush.bf16.msra.mxu0 %v285
    %348 = vmatpush.bf16.msra.mxu0 %v283
    %349 = vmatpush.bf16.msra.mxu0 %v281
    %350 = vmatpush.bf16.msra.mxu0 %v279
    %351 = vmatmul.bf16.gmra.mxu0 %v143
    %v352 = vpop.f32.mrf.mxu0
    %v353 = vadd.f32 %v179, %v352
    %v354 = vpop.f32.mrf.mxu0
    %355 = vdwg.mxu0
    %356 = vmatpush.bf16.msra.mxu0 %v309
    %357 = vmatpush.bf16.msra.mxu0 %v307
    %358 = vmatpush.bf16.msra.mxu0 %v305
    %359 = vmatpush.bf16.msra.mxu0 %v303
    %360 = vmatpush.bf16.msra.mxu0 %v301
    %361 = vmatpush.bf16.msra.mxu0 %v299
    %362 = vmatpush.bf16.msra.mxu0 %v297
    %363 = vmatpush.bf16.msra.mxu0 %v295
    %364 = vmatmul.bf16.gmra.mxu0 %v144
    %v365 = vpop.f32.mrf.mxu0
    %v366 = vadd.f32 %v353, %v365
    %v367 = vpop.f32.mrf.mxu0
    %368 = vdwg.mxu0
    %369 = vmatpush.bf16.msra.mxu0 %v294
    %370 = vmatpush.bf16.msra.mxu0 %v292
    %371 = vmatpush.bf16.msra.mxu0 %v290
    %372 = vmatpush.bf16.msra.mxu0 %v288
    %373 = vmatpush.bf16.msra.mxu0 %v286
    %374 = vmatpush.bf16.msra.mxu0 %v284
    %375 = vmatpush.bf16.msra.mxu0 %v282
    %376 = vmatpush.bf16.msra.mxu0 %v280
    %377 = vmatmul.bf16.gmra.mxu0 %v143
    %v378 = vpop.f32.mrf.mxu0
    %v379 = vadd.f32 %v180, %v378
    %v380 = vpop.f32.mrf.mxu0
    %381 = vdwg.mxu0
    %382 = vmatpush.bf16.msra.mxu0 %v310
    %383 = vmatpush.bf16.msra.mxu0 %v308
    %384 = vmatpush.bf16.msra.mxu0 %v306
    %385 = vmatpush.bf16.msra.mxu0 %v304
    %386 = vmatpush.bf16.msra.mxu0 %v302
    %387 = vmatpush.bf16.msra.mxu0 %v300
    %388 = vmatpush.bf16.msra.mxu0 %v298
    %389 = vmatpush.bf16.msra.mxu0 %v296
    %390 = vmatmul.bf16.gmra.mxu0 %v144
    %v391 = vpop.f32.mrf.mxu0
    %v392 = vadd.f32 %v379, %v391
    %v393 = vpop.f32.mrf.mxu0
    %394 = vdwg.mxu0
    %v395 = vmax.f32 %v366, 0.0
    %v396 = vmax.f32 %v392, 0.0
    %v397 = vpack.c.bf16 %v395, %v395
    %v398 = vpack.c.bf16 %v396, %v396
    %v399 = vld [vmem:[#allocation5] sm:$0xff]
    %v400 = vld [vmem:[#allocation5 + $0x8] sm:$0xff]
    %v401 = vld [vmem:[#allocation5 + $0x10] sm:$0xff]
    %v402 = vld [vmem:[#allocation5 + $0x18] sm:$0xff]
    %v403 = vld [vmem:[#allocation5 + $0x20] sm:$0xff]
    %v404 = vld [vmem:[#allocation5 + $0x28] sm:$0xff]
    %v405 = vld [vmem:[#allocation5 + $0x30] sm:$0xff]
    %v406 = vld [vmem:[#allocation5 + $0x38] sm:$0xff]
    %v407 = vld [vmem:[#allocation5 + $0x40] sm:$0xff]
    %v408 = vld [vmem:[#allocation5 + $0x48] sm:$0xff]
    %v409 = vld [vmem:[#allocation5 + $0x50] sm:$0xff]
    %v410 = vld [vmem:[#allocation5 + $0x58] sm:$0xff]
    %v411 = vld [vmem:[#allocation5 + $0x60] sm:$0xff]
    %v412 = vld [vmem:[#allocation5 + $0x68] sm:$0xff]
    %v413 = vld [vmem:[#allocation5 + $0x70] sm:$0xff]
    %v414 = vld [vmem:[#allocation5 + $0x78] sm:$0xff]
    %v415 = vld [vmem:[#allocation5 + $0x80] sm:$0xff]
    %v416 = vld [vmem:[#allocation5 + $0x88] sm:$0xff]
    %v417 = vld [vmem:[#allocation5 + $0x90] sm:$0xff]
    %v418 = vld [vmem:[#allocation5 + $0x98] sm:$0xff]
    %v419 = vld [vmem:[#allocation5 + $0xa0] sm:$0xff]
    %v420 = vld [vmem:[#allocation5 + $0xa8] sm:$0xff]
    %v421 = vld [vmem:[#allocation5 + $0xb0] sm:$0xff]
    %v422 = vld [vmem:[#allocation5 + $0xb8] sm:$0xff]
    %v423 = vld [vmem:[#allocation5 + $0xc0] sm:$0xff]
    %v424 = vld [vmem:[#allocation5 + $0xc8] sm:$0xff]
    %v425 = vld [vmem:[#allocation5 + $0xd0] sm:$0xff]
    %v426 = vld [vmem:[#allocation5 + $0xd8] sm:$0xff]
    %v427 = vld [vmem:[#allocation5 + $0xe0] sm:$0xff]
    %v428 = vld [vmem:[#allocation5 + $0xe8] sm:$0xff]
    %v429 = vld [vmem:[#allocation5 + $0xf0] sm:$0xff]
    %v430 = vld [vmem:[#allocation5 + $0xf8] sm:$0xff]
    %v431 = vld [vmem:[%s6] sm:$0x3]
    %v433 = vperm.slane %v431, 0
    %v434 = vperm.slane %v431, 1
    %v469 = vunpack.c.l.b16 %v399
    %v470 = vunpack.c.h.b16 %v399
    %v471 = vunpack.c.l.b16 %v400
    %v472 = vunpack.c.h.b16 %v400
    %v473 = vunpack.c.l.b16 %v401
    %v474 = vunpack.c.h.b16 %v401
    %v475 = vunpack.c.l.b16 %v402
    %v476 = vunpack.c.h.b16 %v402
    %v477 = vunpack.c.l.b16 %v403
    %v478 = vunpack.c.h.b16 %v403
    %v479 = vunpack.c.l.b16 %v404
    %v480 = vunpack.c.h.b16 %v404
    %v481 = vunpack.c.l.b16 %v405
    %v482 = vunpack.c.h.b16 %v405
    %v483 = vunpack.c.l.b16 %v406
    %v484 = vunpack.c.h.b16 %v406
    %v485 = vunpack.c.l.b16 %v407
    %v486 = vunpack.c.h.b16 %v407
    %v487 = vunpack.c.l.b16 %v408
    %v488 = vunpack.c.h.b16 %v408
    %v489 = vunpack.c.l.b16 %v409
    %v490 = vunpack.c.h.b16 %v409
    %v491 = vunpack.c.l.b16 %v410
    %v492 = vunpack.c.h.b16 %v410
    %v493 = vunpack.c.l.b16 %v411
    %v494 = vunpack.c.h.b16 %v411
    %v495 = vunpack.c.l.b16 %v412
    %v496 = vunpack.c.h.b16 %v412
    %v497 = vunpack.c.l.b16 %v413
    %v498 = vunpack.c.h.b16 %v413
    %v499 = vunpack.c.l.b16 %v414
    %v500 = vunpack.c.h.b16 %v414
    %v501 = vunpack.c.l.b16 %v415
    %v502 = vunpack.c.h.b16 %v415
    %v503 = vunpack.c.l.b16 %v416
    %v504 = vunpack.c.h.b16 %v416
    %v505 = vunpack.c.l.b16 %v417
    %v506 = vunpack.c.h.b16 %v417
    %v507 = vunpack.c.l.b16 %v418
    %v508 = vunpack.c.h.b16 %v418
    %v509 = vunpack.c.l.b16 %v419
    %v510 = vunpack.c.h.b16 %v419
    %v511 = vunpack.c.l.b16 %v420
    %v512 = vunpack.c.h.b16 %v420
    %v513 = vunpack.c.l.b16 %v421
    %v514 = vunpack.c.h.b16 %v421
    %v515 = vunpack.c.l.b16 %v422
    %v516 = vunpack.c.h.b16 %v422
    %v517 = vunpack.c.l.b16 %v423
    %v518 = vunpack.c.h.b16 %v423
    %v519 = vunpack.c.l.b16 %v424
    %v520 = vunpack.c.h.b16 %v424
    %v521 = vunpack.c.l.b16 %v425
    %v522 = vunpack.c.h.b16 %v425
    %v523 = vunpack.c.l.b16 %v426
    %v524 = vunpack.c.h.b16 %v426
    %v525 = vunpack.c.l.b16 %v427
    %v526 = vunpack.c.h.b16 %v427
    %v527 = vunpack.c.l.b16 %v428
    %v528 = vunpack.c.h.b16 %v428
    %v529 = vunpack.c.l.b16 %v429
    %v530 = vunpack.c.h.b16 %v429
    %v531 = vunpack.c.l.b16 %v430
    %v532 = vunpack.c.h.b16 %v430
    %v533 = vpack.c.b16 %v471, %v469
    %v534 = vpack.c.b16 %v472, %v470
    %v535 = vpack.c.b16 %v475, %v473
    %v536 = vpack.c.b16 %v476, %v474
    %v537 = vpack.c.b16 %v479, %v477
    %v538 = vpack.c.b16 %v480, %v478
    %v539 = vpack.c.b16 %v483, %v481
    %v540 = vpack.c.b16 %v484, %v482
    %v541 = vpack.c.b16 %v487, %v485
    %v542 = vpack.c.b16 %v488, %v486
    %v543 = vpack.c.b16 %v491, %v489
    %v544 = vpack.c.b16 %v492, %v490
    %v545 = vpack.c.b16 %v495, %v493
    %v546 = vpack.c.b16 %v496, %v494
    %v547 = vpack.c.b16 %v499, %v497
    %v548 = vpack.c.b16 %v500, %v498
    %v549 = vpack.c.b16 %v503, %v501
    %v550 = vpack.c.b16 %v504, %v502
    %v551 = vpack.c.b16 %v507, %v505
    %v552 = vpack.c.b16 %v508, %v506
    %v553 = vpack.c.b16 %v511, %v509
    %v554 = vpack.c.b16 %v512, %v510
    %v555 = vpack.c.b16 %v515, %v513
    %v556 = vpack.c.b16 %v516, %v514
    %v557 = vpack.c.b16 %v519, %v517
    %v558 = vpack.c.b16 %v520, %v518
    %v559 = vpack.c.b16 %v523, %v521
    %v560 = vpack.c.b16 %v524, %v522
    %v561 = vpack.c.b16 %v527, %v525
    %v562 = vpack.c.b16 %v528, %v526
    %v563 = vpack.c.b16 %v531, %v529
    %v564 = vpack.c.b16 %v532, %v530
    %597 = vmatpush.bf16.msra.mxu0 %v547
    %598 = vmatpush.bf16.msra.mxu0 %v545
    %599 = vmatpush.bf16.msra.mxu0 %v543
    %600 = vmatpush.bf16.msra.mxu0 %v541
    %601 = vmatpush.bf16.msra.mxu0 %v539
    %602 = vmatpush.bf16.msra.mxu0 %v537
    %603 = vmatpush.bf16.msra.mxu0 %v535
    %604 = vmatpush.bf16.msra.mxu0 %v533
    %605 = vmatmul.bf16.gmra.mxu0 %v397
    %v606 = vpop.f32.mrf.mxu0
    %v607 = vadd.f32 %v433, %v606
    %v608 = vpop.f32.mrf.mxu0
    %609 = vdwg.mxu0
    %610 = vmatpush.bf16.msra.mxu0 %v563
    %611 = vmatpush.bf16.msra.mxu0 %v561
    %612 = vmatpush.bf16.msra.mxu0 %v559
    %613 = vmatpush.bf16.msra.mxu0 %v557
    %614 = vmatpush.bf16.msra.mxu0 %v555
    %615 = vmatpush.bf16.msra.mxu0 %v553
    %616 = vmatpush.bf16.msra.mxu0 %v551
    %617 = vmatpush.bf16.msra.mxu0 %v549
    %618 = vmatmul.bf16.gmra.mxu0 %v398
    %v619 = vpop.f32.mrf.mxu0
    %v620 = vadd.f32 %v607, %v619
    %v621 = vpop.f32.mrf.mxu0
    %622 = vdwg.mxu0
    %623 = vmatpush.bf16.msra.mxu0 %v548
    %624 = vmatpush.bf16.msra.mxu0 %v546
    %625 = vmatpush.bf16.msra.mxu0 %v544
    %626 = vmatpush.bf16.msra.mxu0 %v542
    %627 = vmatpush.bf16.msra.mxu0 %v540
    %628 = vmatpush.bf16.msra.mxu0 %v538
    %629 = vmatpush.bf16.msra.mxu0 %v536
    %630 = vmatpush.bf16.msra.mxu0 %v534
    %631 = vmatmul.bf16.gmra.mxu0 %v397
    %v632 = vpop.f32.mrf.mxu0
    %v633 = vadd.f32 %v434, %v632
    %v634 = vpop.f32.mrf.mxu0
    %635 = vdwg.mxu0
    %636 = vmatpush.bf16.msra.mxu0 %v564
    %637 = vmatpush.bf16.msra.mxu0 %v562
    %638 = vmatpush.bf16.msra.mxu0 %v560
    %639 = vmatpush.bf16.msra.mxu0 %v558
    %640 = vmatpush.bf16.msra.mxu0 %v556
    %641 = vmatpush.bf16.msra.mxu0 %v554
    %642 = vmatpush.bf16.msra.mxu0 %v552
    %643 = vmatpush.bf16.msra.mxu0 %v550
    %644 = vmatmul.bf16.gmra.mxu0 %v398
    %v645 = vpop.f32.mrf.mxu0
    %v646 = vadd.f32 %v633, %v645
    %v647 = vpop.f32.mrf.mxu0
    %648 = vdwg.mxu0
    %v649 = vmax.f32 %v620, 0.0
    %v650 = vmax.f32 %v646, 0.0
    %v651 = vpack.c.bf16 %v649, %v649
    %v652 = vpack.c.bf16 %v650, %v650
    %v653 = vld [vmem:[%s7] sm:$0xf]
    %v654 = vld [vmem:[%s7 + $0x4] sm:$0xf]
    %v655 = vld [vmem:[%s7 + $0x8] sm:$0xf]
    %v656 = vld [vmem:[%s7 + $0xc] sm:$0xf]
    %v657 = vld [vmem:[%s7 + $0x10] sm:$0xf]
    %v658 = vld [vmem:[%s7 + $0x14] sm:$0xf]
    %v659 = vld [vmem:[%s7 + $0x18] sm:$0xf]
    %v660 = vld [vmem:[%s7 + $0x1c] sm:$0xf]
    %v661 = vld [vmem:[%s7 + $0x20] sm:$0xf]
    %v662 = vld [vmem:[%s7 + $0x24] sm:$0xf]
    %v663 = vld [vmem:[%s7 + $0x28] sm:$0xf]
    %v664 = vld [vmem:[%s7 + $0x2c] sm:$0xf]
    %v665 = vld [vmem:[%s7 + $0x30] sm:$0xf]
    %v666 = vld [vmem:[%s7 + $0x34] sm:$0xf]
    %v667 = vld [vmem:[%s7 + $0x38] sm:$0xf]
    %v668 = vld [vmem:[%s7 + $0x3c] sm:$0xf]
    %v669 = vld [vmem:[%s7 + $0x40] sm:$0xf]
    %v670 = vld [vmem:[%s7 + $0x44] sm:$0xf]
    %v671 = vld [vmem:[%s7 + $0x48] sm:$0xf]
    %v672 = vld [vmem:[%s7 + $0x4c] sm:$0xf]
    %v673 = vld [vmem:[%s7 + $0x50] sm:$0xf]
    %v674 = vld [vmem:[%s7 + $0x54] sm:$0xf]
    %v675 = vld [vmem:[%s7 + $0x58] sm:$0xf]
    %v676 = vld [vmem:[%s7 + $0x5c] sm:$0xf]
    %v677 = vld [vmem:[%s7 + $0x60] sm:$0xf]
    %v678 = vld [vmem:[%s7 + $0x64] sm:$0xf]
    %v679 = vld [vmem:[%s7 + $0x68] sm:$0xf]
    %v680 = vld [vmem:[%s7 + $0x6c] sm:$0xf]
    %v681 = vld [vmem:[%s7 + $0x70] sm:$0xf]
    %v682 = vld [vmem:[%s7 + $0x74] sm:$0xf]
    %v683 = vld [vmem:[%s7 + $0x78] sm:$0xf]
    %v684 = vld [vmem:[%s7 + $0x7c] sm:$0xf]
    %v685 = vld [vmem:[%s8] sm:$0x1]
    %v687 = vperm.slane %v685, 0
    %v721 = vunpack.c.l.b16 %v653
    %v722 = vunpack.c.l.b16 %v654
    %v723 = vunpack.c.l.b16 %v655
    %v724 = vunpack.c.l.b16 %v656
    %v725 = vunpack.c.l.b16 %v657
    %v726 = vunpack.c.l.b16 %v658
    %v727 = vunpack.c.l.b16 %v659
    %v728 = vunpack.c.l.b16 %v660
    %v729 = vunpack.c.l.b16 %v661
    %v730 = vunpack.c.l.b16 %v662
    %v731 = vunpack.c.l.b16 %v663
    %v732 = vunpack.c.l.b16 %v664
    %v733 = vunpack.c.l.b16 %v665
    %v734 = vunpack.c.l.b16 %v666
    %v735 = vunpack.c.l.b16 %v667
    %v736 = vunpack.c.l.b16 %v668
    %v737 = vunpack.c.l.b16 %v669
    %v738 = vunpack.c.l.b16 %v670
    %v739 = vunpack.c.l.b16 %v671
    %v740 = vunpack.c.l.b16 %v672
    %v741 = vunpack.c.l.b16 %v673
    %v742 = vunpack.c.l.b16 %v674
    %v743 = vunpack.c.l.b16 %v675
    %v744 = vunpack.c.l.b16 %v676
    %v745 = vunpack.c.l.b16 %v677
    %v746 = vunpack.c.l.b16 %v678
    %v747 = vunpack.c.l.b16 %v679
    %v748 = vunpack.c.l.b16 %v680
    %v749 = vunpack.c.l.b16 %v681
    %v750 = vunpack.c.l.b16 %v682
    %v751 = vunpack.c.l.b16 %v683
    %v752 = vunpack.c.l.b16 %v684
    %v753 = vpack.c.b16 %v722, %v721
    %v754 = vpack.c.b16 %v724, %v723
    %v755 = vpack.c.b16 %v726, %v725
    %v756 = vpack.c.b16 %v728, %v727
    %v757 = vpack.c.b16 %v730, %v729
    %v758 = vpack.c.b16 %v732, %v731
    %v759 = vpack.c.b16 %v734, %v733
    %v760 = vpack.c.b16 %v736, %v735
    %v761 = vpack.c.b16 %v738, %v737
    %v762 = vpack.c.b16 %v740, %v739
    %v763 = vpack.c.b16 %v742, %v741
    %v764 = vpack.c.b16 %v744, %v743
    %v765 = vpack.c.b16 %v746, %v745
    %v766 = vpack.c.b16 %v748, %v747
    %v767 = vpack.c.b16 %v750, %v749
    %v768 = vpack.c.b16 %v752, %v751
    %785 = vmatpush.bf16.msra.mxu0 %v760
    %786 = vmatpush.bf16.msra.mxu0 %v759
    %787 = vmatpush.bf16.msra.mxu0 %v758
    %788 = vmatpush.bf16.msra.mxu0 %v757
    %789 = vmatpush.bf16.msra.mxu0 %v756
    %790 = vmatpush.bf16.msra.mxu0 %v755
    %791 = vmatpush.bf16.msra.mxu0 %v754
    %792 = vmatpush.bf16.msra.mxu0 %v753
    %793 = vmatmul.bf16.gmra.mxu0 %v651
    %v794 = vpop.f32.mrf.mxu0
    %v795 = vadd.f32 %v687, %v794
    %v796 = vpop.f32.mrf.mxu0
    %797 = vdwg.mxu0
    %798 = vmatpush.bf16.msra.mxu0 %v768
    %799 = vmatpush.bf16.msra.mxu0 %v767
    %800 = vmatpush.bf16.msra.mxu0 %v766
    %801 = vmatpush.bf16.msra.mxu0 %v765
    %802 = vmatpush.bf16.msra.mxu0 %v764
    %803 = vmatpush.bf16.msra.mxu0 %v763
    %804 = vmatpush.bf16.msra.mxu0 %v762
    %805 = vmatpush.bf16.msra.mxu0 %v761
    %806 = vmatmul.bf16.gmra.mxu0 %v652
    %v807 = vpop.f32.mrf.mxu0
    %v808 = vadd.f32 %v795, %v807
    %v809 = vpop.f32.mrf.mxu0
    %810 = vdwg.mxu0
    %v811 = vmul.f32 %v808, %v808
    %v812 = vadd.f32 %v811, 1e-08
    %v813 = vrcp.pop %v812
    %v814 = vmul.f32 %v812, %v813
    %v815 = vsub.f32 1.0, %v814
    %v816 = vmul.f32 %v813, %v815
    %v817 = vadd.f32 %v813, %v816
    %vm818 = vweird.f32 %v812
    %vm819 = vweird.f32 %v813
    %vm820 = vmor %vm818, %vm819
    %v821 = vsel %vm820, %v813, %v817
    %v822 = vand.u32 2147483647, %v812
    %vm823 = vcmp.eq.f32.partialorder %v822, 8.507059e+37
    %v824 = vand.u32 %v812, 2147483648
    %v825 = vor.u32 1.1754944e-38, %v824
    %v826 = vsel %vm823, %v825, %v821
    %v827 = vmul.f32 1.0, %v826
    %v828 = vlaneseq
    %v829 = vand.u32 %v828, 127
    %vm830 = vcmp.lt.s32.totalorder %v829, 0
    %v831 = vsub.s32 0, %v829
    %v832 = vsel %vm830, %v831, %v829
    %v833 = vand.u32 %v832, 65535
    %v834 = vshrl.u32 %v832, 16
    %v836 = vmul.u32 %v833, 52429
    %v837 = vmul.u32 %v833, 52428
    %v838 = vmul.u32 %v834, 52429
    %v839 = vmul.u32 %v834, 52428
    %v840 = vshll.u32 %v837, 16
    %v841 = vshrl.u32 %v837, 16
    %v842 = vshll.u32 %v838, 16
    %v843 = vshrl.u32 %v838, 16
    %vm844 = vc.u32 %v836, %v840
    %v845 = vsel %vm844, 1, 0
    %v846 = vadd.s32 %v836, %v840
    %v847 = vadd.s32 %v839, %v845
    %vm848 = vc.u32 %v846, %v842
    %v849 = vsel %vm848, 1, 0
    %v850 = vadd.s32 %v846, %v842
    %v851 = vadd.s32 %v847, %v849
    %v852 = vadd.s32 %v851, %v841
    %v853 = vadd.s32 %v852, %v843
    %v854 = vshrl.u32 %v853, 2
    %v855 = vmul.u32 %v854, 5
    %v856 = vsub.s32 %v832, %v855
    %v857 = vsub.s32 0, %v856
    %v858 = vsel %vm830, %v857, %v856
    %vm859 = vcmp.ne.s32.totalorder %v858, 0
    %vm860 = vcmp.lt.s32.totalorder %v858, 0
    %vm861 = vmand %vm860, %vm859
    %v862 = vadd.s32 %v858, 5
    %v863 = vsel %vm861, %v862, %v858
    %vm864 = vcmp.eq.s32.totalorder %v863, 0
    %v865 = vmul.f32 %v66, 1.442695
    %v866 = vpow.pop %v865
    %v867 = vmul.f32 %v866, %v827
    %v868 = vsel %vm864, %v867, %v66
    %869 = vst.msk [vmem:[#allocation7] sm:$0xff] %vm104, %v868
    // Predicated region
    $region46: #{tpu_custom_call.1} parent=1 // pred_check
      _
    $region47: #{tpu_custom_call.1} parent=1 // pred_check_branch
      %871 = sbr.rel (0) target = $region49
    $region48: #{tpu_custom_call.1} parent=1 // pred_region
      %873 = vsyncadd [#allocation4], 0
      %s875 = sshll.u32 [#allocation7], 4
      %s876 = int_to_ptr.vmem [resolvable:$true] %s875
      %s877 = sshll.u32 %s9, 4
      %s878 = int_to_ptr.hbm [resolvable:$true] %s877
      %880 = dma.vmem_to_hbm [thread:$0]  %s876, 128, %s878, [#allocation4]
    $region49: #{tpu_custom_call.1} parent=1 // pred_fallthru
      _
    // Predicated region
    $region50: #{tpu_custom_call.1} parent=1 // pred_check
      _
    $region51: #{tpu_custom_call.1} parent=1 // pred_check_branch
      %882 = sbr.rel (0) target = $region53
    $region52: #{tpu_custom_call.1} parent=1 // pred_region
      %884 = dma.done [#allocation4], 128
    $region53: #{tpu_custom_call.1} parent=1 // pred_fallthru
      _
    %885 = vsyncpa [#allocation3], 1
    %886 = vsyncpa [#allocation6], 1
    %887 = vsyncpa [#allocation4], 1

</llo_original>
